<compile_context>
chip_gen: v5e
topology: v5e:2x2
jax: 0.10.0
libtpu: 0.0.40
codegen_flags: <defaults>
</compile_context>

<pallas_src>
import functools

import jax
import jax.numpy as jnp
import numpy as np
from jax.experimental import pallas as pl
from jax.experimental.pallas import tpu as pltpu

# ---- module hyper-parameters (match the PyTorch module defaults) ----
DIM = 16          # dim
CA_HEADS = 4      # ca_num_heads
EXPAND = 2        # expand_ratio
BN_EPS = 1e-5

_SQRT1_2 = 0.7071067811865476


# =====================  in-kernel helpers  =====================

def _erf_approx(x):
    # Abramowitz & Stegun 7.1.26, max abs error ~1.5e-7; uses only VPU/EUP ops
    # (abs, mul, add, exp, reciprocal, select) so it lowers on Mosaic without an erf primitive.
    a1, a2, a3, a4, a5 = 0.254829592, -0.284496736, 1.421413741, -1.453152027, 1.061405429
    pp = 0.3275911
    ax = jnp.abs(x)
    t = 1.0 / (1.0 + pp * ax)
    poly = ((((a5 * t + a4) * t + a3) * t + a2) * t + a1) * t
    y = 1.0 - poly * jnp.exp(-ax * ax)
    return jnp.where(x >= 0, y, -y)


def _gelu_exact(x):
    # exact (erf) GELU, matching nn.GELU() / jax.nn.gelu(approximate=False) to ~1e-7
    return 0.5 * x * (1.0 + _erf_approx(x * _SQRT1_2))


# =====================  Pallas kernels  =====================

def conv_kernel(xr_ref, m1_ref, twdt_ref, bf_ref, o_ref, *, Cg, BH):
    # Per head (grid step):
    #   Y1 = M1 @ XR           (Ws-projection + H-axis depthwise conv, fused operator)
    #   for each channel c:    rows [c*BH, (c+1)*BH) of the output
    #     O_c = Y1_c @ T_WD[c]^T + Bfield[c]   (W-axis and D-axis convs + all conv biases)
    y1 = jnp.dot(m1_ref[...], xr_ref[...], preferred_element_type=jnp.float32)   # (Cg*BH, WD)
    for c in range(Cg):
        r0 = c * BH
        o_ref[r0:r0 + BH, :] = (
            jnp.dot(y1[r0:r0 + BH, :], twdt_ref[c],
                    preferred_element_type=jnp.float32)
            + bf_ref[c])


def tail_kernel(conv_ref, xt_ref, w0_ref, b0_ref, g_ref, be_ref,
                w1_ref, b1_ref, wv_ref, wp_ref, bp_ref, o_ref):
    # Fused: proj0 (grouped 1x1 conv as block-diag matmul) -> BatchNorm3d (training-mode,
    # biased variance, stats over all B*H*W*D tokens) -> exact GELU -> proj1 -> * v -> proj.
    # Everything is channel-major (C_small, M) so the lane dim is M = 1024 (dense stores).
    y0 = jnp.dot(w0_ref[...], conv_ref[...],
                 preferred_element_type=jnp.float32) + b0_ref[...]        # (E, M)
    mean = jnp.mean(y0, axis=1, keepdims=True)                            # (E, 1)
    var = jnp.mean((y0 - mean) * (y0 - mean), axis=1, keepdims=True)      # biased, like torch BN
    scale = g_ref[...] * jax.lax.rsqrt(var + BN_EPS)
    shift = be_ref[...] - mean * scale
    ya = _gelu_exact(y0 * scale + shift)                                  # (E, M)
    z = jnp.dot(w1_ref[...], ya,
                preferred_element_type=jnp.float32) + b1_ref[...]         # (C, M)
    v = jnp.dot(wv_ref[...], xt_ref[...],
                preferred_element_type=jnp.float32)                       # (C, M)  == v^T
    o_ref[...] = (jnp.dot(wp_ref[...], z * v,
                          preferred_element_type=jnp.float32) + bp_ref[...])


# =====================  pallas_call wrappers  =====================

def conv_stage(xr, M1, TWDt, Bf, *, heads, Cg, BH, WD, C):
    kern = functools.partial(conv_kernel, Cg=Cg, BH=BH)
    return pl.pallas_call(
        kern,
        out_shape=jax.ShapeDtypeStruct((heads, Cg * BH, WD), jnp.float32),
        grid=(heads,),
        in_specs=[
            pl.BlockSpec((C * BH, WD), lambda i: (0, 0)),            # XR (shared)
            pl.BlockSpec((None, Cg * BH, C * BH), lambda i: (i, 0, 0)),   # M1[head]
            pl.BlockSpec((None, Cg, WD, WD), lambda i: (i, 0, 0, 0)),     # T_WD^T[head]
            pl.BlockSpec((None, Cg, 1, WD), lambda i: (i, 0, 0, 0)),      # bias field[head]
        ],
        out_specs=pl.BlockSpec((None, Cg * BH, WD), lambda i: (i, 0, 0)),
        compiler_params=pltpu.CompilerParams(dimension_semantics=("parallel",)),
    )(xr, M1, TWDt, Bf)


def tail_stage(convT, xT, ops, *, C, E, M):
    return pl.pallas_call(
        tail_kernel,
        out_shape=jax.ShapeDtypeStruct((C, M), jnp.float32),
        grid=(1,),
        in_specs=[
            pl.BlockSpec((C, M), lambda i: (0, 0)),    # conv output, channel-major
            pl.BlockSpec((C, M), lambda i: (0, 0)),    # x^T (for v = Wv @ x^T)
            pl.BlockSpec((E, C), lambda i: (0, 0)),    # W0 (block-diag, cols permuted)
            pl.BlockSpec((E, 1), lambda i: (0, 0)),    # b0
            pl.BlockSpec((E, 1), lambda i: (0, 0)),    # gamma
            pl.BlockSpec((E, 1), lambda i: (0, 0)),    # beta
            pl.BlockSpec((C, E), lambda i: (0, 0)),    # W1
            pl.BlockSpec((C, 1), lambda i: (0, 0)),    # b1
            pl.BlockSpec((C, C), lambda i: (0, 0)),    # Wv
            pl.BlockSpec((C, C), lambda i: (0, 0)),    # Wp
            pl.BlockSpec((C, 1), lambda i: (0, 0)),    # bp
        ],
        out_specs=pl.BlockSpec((C, M), lambda i: (0, 0)),
        compiler_params=pltpu.CompilerParams(dimension_semantics=("arbitrary",)),
    )(convT, xT, ops['W0p'], ops['b0'], ops['gamma'], ops['beta'],
      ops['W1'], ops['b1'], ops['Wv'], ops['Wp'], ops['bp'])


# =====================  operator precomputation (host-side, tiny)  =====================

def _toeplitz(w, L):
    # 'same'-padded cross-correlation matrix: out[l] = sum_t w[t] * in[l + t - p]
    K = w.shape[0]
    pad = (K - 1) // 2
    T = np.zeros((L, L), np.float32)
    for l in range(L):
        for t in range(K):
            lp = l + t - pad
            if 0 <= lp < L:
                T[l, lp] = w[t]
    return T


def prepare_ops(p, B, H, W, D):
    heads, C, E = CA_HEADS, DIM, DIM * EXPAND
    Cg = C // heads
    BH, WD = B * H, W * D

    Ws = np.asarray(p['Ws'], np.float32)
    M1 = np.zeros((heads, Cg * BH, C * BH), np.float32)
    TWDt = np.zeros((heads, Cg, WD, WD), np.float32)
    Bf = np.zeros((heads, Cg, 1, WD), np.float32)

    for i in range(heads):
        wH = np.asarray(p['lc'][i][0], np.float32)    # (Cg, K)
        wW = np.asarray(p['lc'][i][1], np.float32)
        wDD = np.asarray(p['lc'][i][2], np.float32)
        bH = np.asarray(p['lcb'][i][0], np.float32)   # (Cg,)
        bW = np.asarray(p['lcb'][i][1], np.float32)
        bD = np.asarray(p['lcb'][i][2], np.float32)

        A = np.zeros((Cg * BH, Cg * BH), np.float32)  # block-diag H-conv over (c, b)
        for c in range(Cg):
            TH = _toeplitz(wH[c], H)
            for b in range(B):
                r0 = (c * B + b) * H
                A[r0:r0 + H, r0:r0 + H] = TH
            TW = _toeplitz(wW[c], W)
            TD = _toeplitz(wDD[c], D)
            TWDt[i, c] = np.kron(TW, TD).T            # (WD, WD), transposed for right-multiply
            rW = TW.sum(axis=1)                       # conv of a constant field (boundary-aware)
            rD = TD.sum(axis=1)
            Bf[i, c, 0] = (bH[c] * np.outer(rW, rD)
                           + bW[c] * rD[None, :]
                           + bD[c]).reshape(WD)
        # fold the per-head slice of the s-projection into the H-conv operator:
        Ksel = np.kron(Ws[i * Cg:(i + 1) * Cg, :], np.eye(BH, dtype=np.float32))  # (Cg*BH, C*BH)
        M1[i] = A @ Ksel

    # proj0 weight with its input columns permuted from torch channel order (cg*heads+head)
    # to the kernel's conv-output order (head*Cg+cg), so no transpose is needed after the conv.
    perm = np.array([(j % Cg) * heads + (j // Cg) for j in range(C)], np.int32)
    W0p = np.asarray(p['W0d'], np.float32)[:, perm]

    return {
        'M1': jnp.asarray(M1), 'TWDt': jnp.asarray(TWDt), 'Bf': jnp.asarray(Bf),
        'W0p': jnp.asarray(W0p),
        'b0': jnp.asarray(p['b0']).reshape(E, 1),
        'gamma': jnp.asarray(p['gamma']).reshape(E, 1),
        'beta': jnp.asarray(p['beta']).reshape(E, 1),
        'W1': jnp.asarray(p['W1']),
        'b1': jnp.asarray(p['b1']).reshape(DIM, 1),
        'Wv': jnp.asarray(p['Wv']),
        'Wp': jnp.asarray(p['Wp']),
        'bp': jnp.asarray(p['bp']).reshape(DIM, 1),
    }


# =====================  full forward (Pallas path)  =====================

def attention_forward_pallas(x, ops, H, W, D):
    B, N, C = x.shape
    E = C * EXPAND
    heads = CA_HEADS
    Cg = C // heads
    M = B * N

    xT = jnp.transpose(x.reshape(M, C))           # (C, M)  -- one XLA transpose at entry
    xr = xT.reshape(C * B * H, W * D)             # free reshape: rows (k, b, h), cols (w, d)

    conv = conv_stage(xr, ops['M1'], ops['TWDt'], ops['Bf'],
                      heads=heads, Cg=Cg, BH=B * H, WD=W * D, C=C)   # (heads, Cg*B*H, W*D)
    convT = conv.reshape(C, M)                    # free reshape: channel-major (head, cg) rows

    outT = tail_stage(convT, xT, ops, C=C, E=E, M=M)                 # (C, M)
    return jnp.transpose(outT).reshape(B, N, C)   # one XLA transpose at exit
    # NOTE: self.dw_conv and self.proj_drop (p=0.0) are unused / identity in this forward.
    # TODO(synk): BatchNorm3d running-stat (running_mean/var) updates are not modeled;
    # training-mode batch statistics are used for normalization, matching the reference.


# =====================  pure-JAX reference (for verification)  =====================

def ref_dwconv1d(x, w, b, axis):
    K = w.shape[1]
    p_ = (K - 1) // 2
    L = x.shape[axis]
    pad = [(0, 0)] * 5
    pad[axis] = (p_, p_)
    xp = jnp.pad(x, pad)
    out = jnp.zeros_like(x)
    for t in range(K):
        sl = [slice(None)] * 5
        sl[axis] = slice(t, t + L)
        out = out + w[:, t].reshape(1, -1, 1, 1, 1) * xp[tuple(sl)]
    return out + b.reshape(1, -1, 1, 1, 1)


def reference_forward(x, p, H, W, D):
    B, N, C = x.shape
    heads = CA_HEADS
    Cg = C // heads
    x2 = x.reshape(B * N, C)
    v = x2 @ p['Wv'].T
    s = jnp.transpose((x2 @ p['Ws'].T).reshape(B, H, W, D, heads, Cg), (4, 0, 5, 1, 2, 3))
    outs = []
    for i in range(heads):
        si = s[i]
        si = ref_dwconv1d(si, p['lc'][i][0], p['lcb'][i][0], axis=2)
        si = ref_dwconv1d(si, p['lc'][i][1], p['lcb'][i][1], axis=3)
        si = ref_dwconv1d(si, p['lc'][i][2], p['lcb'][i][2], axis=4)
        outs.append(si)
    s_out = jnp.stack(outs, axis=2).reshape(B, C, H, W, D)
    t = jnp.transpose(s_out.reshape(B, C, N), (0, 2, 1)).reshape(B * N, C)
    y0 = t @ p['W0d'].T + p['b0']
    mean = y0.mean(axis=0)
    var = y0.var(axis=0)
    yhat = (y0 - mean) / jnp.sqrt(var + BN_EPS) * p['gamma'] + p['beta']
    y = jax.nn.gelu(yhat, approximate=False)
    z = (y @ p['W1'].T + p['b1']) * v
    out = z @ p['Wp'].T + p['bp']
    return out.reshape(B, N, C)


# =====================  deterministic parameter init  =====================

def init_params(key):
    C, heads, E = DIM, CA_HEADS, DIM * EXPAND
    Cg = C // heads
    G = C // heads                    # split_groups
    in_per, out_per = C // G, E // G
    keys = iter(jax.random.split(key, 64))

    def nrm(shape, scale):
        return scale * jax.random.normal(next(keys), shape, dtype=jnp.float32)

    p = {}
    p['Wv'] = nrm((C, C), C ** -0.5)          # self.v (no bias)
    p['Ws'] = nrm((C, C), C ** -0.5)          # self.s (no bias)
    p['lc'], p['lcb'] = [], []
    for i in range(heads):
        K = 3 + 2 * i
        p['lc'].append([nrm((Cg, K), K ** -0.5) for _ in range(3)])   # local_conv_{i+1}_{1,2,3}
        p['lcb'].append([nrm((Cg,), 0.1) for _ in range(3)])
    # proj0: Conv3d(C, E, 1, groups=split_groups) -> dense block-diagonal (E, C) weight
    W0 = nrm((E, in_per), in_per ** -0.5)
    W0d = jnp.zeros((E, C), jnp.float32)
    for g in range(G):
        W0d = W0d.at[g * out_per:(g + 1) * out_per,
                     g * in_per:(g + 1) * in_per].set(W0[g * out_per:(g + 1) * out_per])
    p['W0d'] = W0d
    p['b0'] = nrm((E,), 0.1)
    p['gamma'] = 1.0 + nrm((E,), 0.1)         # BatchNorm3d weight
    p['beta'] = nrm((E,), 0.1)                # BatchNorm3d bias
    p['W1'] = nrm((C, E), E ** -0.5)          # proj1 (1x1 conv)
    p['b1'] = nrm((C,), 0.1)
    p['Wp'] = nrm((C, C), C ** -0.5)          # self.proj (Linear)
    p['bp'] = nrm((C,), 0.1)
    return p


# =====================  main  =====================

if __name__ == "__main__":
    B, H, W, D = 2, 8, 8, 8
    C = DIM
    N = H * W * D                              # x is (B, N, C) with N = H*W*D
    key = jax.random.PRNGKey(0)
    kx, kp = jax.random.split(key)
    x = jax.random.normal(kx, (B, N, C), dtype=jnp.float32)
    params = init_params(kp)
    ops = prepare_ops(params, B, H, W, D)      # tiny host-side operator folding (once)

    out = attention_forward_pallas(x, ops, H, W, D)
    out = jax.block_until_ready(out)

    with jax.default_matmul_precision("highest"):
        ref = reference_forward(x, params, H, W, D)
    ref = jax.block_until_ready(ref)

    assert out.shape == (B, N, C)
    assert bool(jnp.all(jnp.isfinite(out)))
    max_err = float(jnp.max(jnp.abs(out - ref)))
    assert max_err < 5e-3, f"mismatch vs pure-JAX reference: {max_err}"
    print("KERNEL_OK")
</pallas_src>

<mosaic_0001>
module attributes {stable_mosaic.version = 11 : i64} {
  func.func @conv_kernel(%arg0: i32, %arg1: memref<256x64xf32, #tpu.memory_space<vmem>>, %arg2: memref<1x64x256xf32, #tpu.memory_space<vmem>>, %arg3: memref<1x4x64x64xf32, #tpu.memory_space<vmem>>, %arg4: memref<1x4x1x64xf32, #tpu.memory_space<vmem>>, %arg5: memref<1x64x64xf32, #tpu.memory_space<vmem>>) attributes {dimension_semantics = [#tpu.dimension_semantics<parallel>], iteration_bounds = array<i64: 4>, scalar_prefetch = 0 : i64, scratch_operands = 0 : i64, tpu.core_type = #tpu.core_type<tc>, window_params = [{pipeline_mode = #tpu.pipeline_mode<synchronous>, transform_indices = @transform_0, window_bounds = array<i64: 256, 64>}, {transform_indices = @transform_1, window_bounds = array<i64: 1, 64, 256>}, {transform_indices = @transform_2, window_bounds = array<i64: 1, 4, 64, 64>}, {transform_indices = @transform_3, window_bounds = array<i64: 1, 4, 1, 64>}, {transform_indices = @transform_4, window_bounds = array<i64: 1, 64, 64>}]} {
    %c0 = arith.constant 0 : index
    %c0_0 = arith.constant 0 : index
    %c0_1 = arith.constant 0 : index
    %0 = vector.load %arg2[%c0, %c0_0, %c0_1] : memref<1x64x256xf32, #tpu.memory_space<vmem>>, vector<1x64x256xf32>
    %1 = vector.shape_cast %0 : vector<1x64x256xf32> to vector<64x256xf32>
    %c0_2 = arith.constant 0 : index
    %c0_3 = arith.constant 0 : index
    %2 = vector.load %arg1[%c0_2, %c0_3] : memref<256x64xf32, #tpu.memory_space<vmem>>, vector<256x64xf32>
    %cst = arith.constant dense<0.000000e+00> : vector<64x64xf32>
    %3 = tpu.matmul %1, %2, %cst {dimension_numbers = #tpu.dot_dimension_numbers<[1], [0], [0], [1], [0, 0, 1, 1], [], []>} : vector<64x256xf32>, vector<256x64xf32>, vector<64x64xf32> -> vector<64x64xf32>
    %4 = vector.extract_strided_slice %3 {offsets = [0, 0], sizes = [16, 64], strides = [1, 1]} : vector<64x64xf32> to vector<16x64xf32>
    %c0_4 = arith.constant 0 : index
    %c0_5 = arith.constant 0 : index
    %c0_6 = arith.constant 0 : index
    %c0_7 = arith.constant 0 : index
    %5 = vector.load %arg3[%c0_4, %c0_5, %c0_6, %c0_7] : memref<1x4x64x64xf32, #tpu.memory_space<vmem>>, vector<1x1x64x64xf32>
    %6 = vector.shape_cast %5 : vector<1x1x64x64xf32> to vector<64x64xf32>
    %cst_8 = arith.constant dense<0.000000e+00> : vector<16x64xf32>
    %7 = tpu.matmul %4, %6, %cst_8 {dimension_numbers = #tpu.dot_dimension_numbers<[1], [0], [0], [1], [0, 0, 1, 1], [], []>} : vector<16x64xf32>, vector<64x64xf32>, vector<16x64xf32> -> vector<16x64xf32>
    %c0_9 = arith.constant 0 : index
    %c0_10 = arith.constant 0 : index
    %c0_11 = arith.constant 0 : index
    %c0_12 = arith.constant 0 : index
    %8 = vector.load %arg4[%c0_9, %c0_10, %c0_11, %c0_12] : memref<1x4x1x64xf32, #tpu.memory_space<vmem>>, vector<1x1x1x64xf32>
    %9 = vector.shape_cast %8 : vector<1x1x1x64xf32> to vector<1x64xf32>
    %10 = vector.broadcast %9 : vector<1x64xf32> to vector<16x64xf32>
    %11 = arith.addf %7, %10 : vector<16x64xf32>
    %c0_13 = arith.constant 0 : index
    %c0_14 = arith.constant 0 : index
    %c0_15 = arith.constant 0 : index
    %12 = vector.load %arg5[%c0_13, %c0_14, %c0_15] : memref<1x64x64xf32, #tpu.memory_space<vmem>>, vector<1x16x64xf32>
    %13 = vector.shape_cast %12 : vector<1x16x64xf32> to vector<16x64xf32>
    %14 = vector.shape_cast %11 : vector<16x64xf32> to vector<1x16x64xf32>
    tpu.vector_store %arg5[%c0_13, %c0_14, %c0_15], %14 {strides = array<i32>} : memref<1x64x64xf32, #tpu.memory_space<vmem>>, vector<1x16x64xf32>,
    %15 = vector.extract_strided_slice %3 {offsets = [16, 0], sizes = [16, 64], strides = [1, 1]} : vector<64x64xf32> to vector<16x64xf32>
    %c0_16 = arith.constant 0 : index
    %c1 = arith.constant 1 : index
    %c0_17 = arith.constant 0 : index
    %c0_18 = arith.constant 0 : index
    %16 = vector.load %arg3[%c0_16, %c1, %c0_17, %c0_18] : memref<1x4x64x64xf32, #tpu.memory_space<vmem>>, vector<1x1x64x64xf32>
    %17 = vector.shape_cast %16 : vector<1x1x64x64xf32> to vector<64x64xf32>
    %cst_19 = arith.constant dense<0.000000e+00> : vector<16x64xf32>
    %18 = tpu.matmul %15, %17, %cst_19 {dimension_numbers = #tpu.dot_dimension_numbers<[1], [0], [0], [1], [0, 0, 1, 1], [], []>} : vector<16x64xf32>, vector<64x64xf32>, vector<16x64xf32> -> vector<16x64xf32>
    %c0_20 = arith.constant 0 : index
    %c1_21 = arith.constant 1 : index
    %c0_22 = arith.constant 0 : index
    %c0_23 = arith.constant 0 : index
    %19 = vector.load %arg4[%c0_20, %c1_21, %c0_22, %c0_23] : memref<1x4x1x64xf32, #tpu.memory_space<vmem>>, vector<1x1x1x64xf32>
    %20 = vector.shape_cast %19 : vector<1x1x1x64xf32> to vector<1x64xf32>
    %21 = vector.broadcast %20 : vector<1x64xf32> to vector<16x64xf32>
    %22 = arith.addf %18, %21 : vector<16x64xf32>
    %c0_24 = arith.constant 0 : index
    %c16 = arith.constant 16 : index
    %c0_25 = arith.constant 0 : index
    %23 = vector.load %arg5[%c0_24, %c16, %c0_25] : memref<1x64x64xf32, #tpu.memory_space<vmem>>, vector<1x16x64xf32>
    %24 = vector.shape_cast %23 : vector<1x16x64xf32> to vector<16x64xf32>
    %25 = vector.shape_cast %22 : vector<16x64xf32> to vector<1x16x64xf32>
    tpu.vector_store %arg5[%c0_24, %c16, %c0_25], %25 {strides = array<i32>} : memref<1x64x64xf32, #tpu.memory_space<vmem>>, vector<1x16x64xf32>,
    %26 = vector.extract_strided_slice %3 {offsets = [32, 0], sizes = [16, 64], strides = [1, 1]} : vector<64x64xf32> to vector<16x64xf32>
    %c0_26 = arith.constant 0 : index
    %c2 = arith.constant 2 : index
    %c0_27 = arith.constant 0 : index
    %c0_28 = arith.constant 0 : index
    %27 = vector.load %arg3[%c0_26, %c2, %c0_27, %c0_28] : memref<1x4x64x64xf32, #tpu.memory_space<vmem>>, vector<1x1x64x64xf32>
    %28 = vector.shape_cast %27 : vector<1x1x64x64xf32> to vector<64x64xf32>
    %cst_29 = arith.constant dense<0.000000e+00> : vector<16x64xf32>
    %29 = tpu.matmul %26, %28, %cst_29 {dimension_numbers = #tpu.dot_dimension_numbers<[1], [0], [0], [1], [0, 0, 1, 1], [], []>} : vector<16x64xf32>, vector<64x64xf32>, vector<16x64xf32> -> vector<16x64xf32>
    %c0_30 = arith.constant 0 : index
    %c2_31 = arith.constant 2 : index
    %c0_32 = arith.constant 0 : index
    %c0_33 = arith.constant 0 : index
    %30 = vector.load %arg4[%c0_30, %c2_31, %c0_32, %c0_33] : memref<1x4x1x64xf32, #tpu.memory_space<vmem>>, vector<1x1x1x64xf32>
    %31 = vector.shape_cast %30 : vector<1x1x1x64xf32> to vector<1x64xf32>
    %32 = vector.broadcast %31 : vector<1x64xf32> to vector<16x64xf32>
    %33 = arith.addf %29, %32 : vector<16x64xf32>
    %c0_34 = arith.constant 0 : index
    %c32 = arith.constant 32 : index
    %c0_35 = arith.constant 0 : index
    %34 = vector.load %arg5[%c0_34, %c32, %c0_35] : memref<1x64x64xf32, #tpu.memory_space<vmem>>, vector<1x16x64xf32>
    %35 = vector.shape_cast %34 : vector<1x16x64xf32> to vector<16x64xf32>
    %36 = vector.shape_cast %33 : vector<16x64xf32> to vector<1x16x64xf32>
    tpu.vector_store %arg5[%c0_34, %c32, %c0_35], %36 {strides = array<i32>} : memref<1x64x64xf32, #tpu.memory_space<vmem>>, vector<1x16x64xf32>,
    %37 = vector.extract_strided_slice %3 {offsets = [48, 0], sizes = [16, 64], strides = [1, 1]} : vector<64x64xf32> to vector<16x64xf32>
    %c0_36 = arith.constant 0 : index
    %c3 = arith.constant 3 : index
    %c0_37 = arith.constant 0 : index
    %c0_38 = arith.constant 0 : index
    %38 = vector.load %arg3[%c0_36, %c3, %c0_37, %c0_38] : memref<1x4x64x64xf32, #tpu.memory_space<vmem>>, vector<1x1x64x64xf32>
    %39 = vector.shape_cast %38 : vector<1x1x64x64xf32> to vector<64x64xf32>
    %cst_39 = arith.constant dense<0.000000e+00> : vector<16x64xf32>
    %40 = tpu.matmul %37, %39, %cst_39 {dimension_numbers = #tpu.dot_dimension_numbers<[1], [0], [0], [1], [0, 0, 1, 1], [], []>} : vector<16x64xf32>, vector<64x64xf32>, vector<16x64xf32> -> vector<16x64xf32>
    %c0_40 = arith.constant 0 : index
    %c3_41 = arith.constant 3 : index
    %c0_42 = arith.constant 0 : index
    %c0_43 = arith.constant 0 : index
    %41 = vector.load %arg4[%c0_40, %c3_41, %c0_42, %c0_43] : memref<1x4x1x64xf32, #tpu.memory_space<vmem>>, vector<1x1x1x64xf32>
    %42 = vector.shape_cast %41 : vector<1x1x1x64xf32> to vector<1x64xf32>
    %43 = vector.broadcast %42 : vector<1x64xf32> to vector<16x64xf32>
    %44 = arith.addf %40, %43 : vector<16x64xf32>
    %c0_44 = arith.constant 0 : index
    %c48 = arith.constant 48 : index
    %c0_45 = arith.constant 0 : index
    %45 = vector.load %arg5[%c0_44, %c48, %c0_45] : memref<1x64x64xf32, #tpu.memory_space<vmem>>, vector<1x16x64xf32>
    %46 = vector.shape_cast %45 : vector<1x16x64xf32> to vector<16x64xf32>
    %47 = vector.shape_cast %44 : vector<16x64xf32> to vector<1x16x64xf32>
    tpu.vector_store %arg5[%c0_44, %c48, %c0_45], %47 {strides = array<i32>} : memref<1x64x64xf32, #tpu.memory_space<vmem>>, vector<1x16x64xf32>,
    return
  }
  func.func @transform_0(%arg0: i32) -> (i32, i32) {
    %c0_i32 = arith.constant 0 : i32
    %c0_i32_0 = arith.constant 0 : i32
    %c0_i32_1 = arith.constant 0 : i32
    return %c0_i32, %c0_i32_0 : i32, i32
  }
  func.func @transform_1(%arg0: i32) -> (i32, i32, i32) {
    %c0_i32 = arith.constant 0 : i32
    %c0_i32_0 = arith.constant 0 : i32
    %c0_i32_1 = arith.constant 0 : i32
    return %arg0, %c0_i32, %c0_i32_0 : i32, i32, i32
  }
  func.func @transform_2(%arg0: i32) -> (i32, i32, i32, i32) {
    %c0_i32 = arith.constant 0 : i32
    %c0_i32_0 = arith.constant 0 : i32
    %c0_i32_1 = arith.constant 0 : i32
    %c0_i32_2 = arith.constant 0 : i32
    return %arg0, %c0_i32, %c0_i32_0, %c0_i32_1 : i32, i32, i32, i32
  }
  func.func @transform_3(%arg0: i32) -> (i32, i32, i32, i32) {
    %c0_i32 = arith.constant 0 : i32
    %c0_i32_0 = arith.constant 0 : i32
    %c0_i32_1 = arith.constant 0 : i32
    %c0_i32_2 = arith.constant 0 : i32
    return %arg0, %c0_i32, %c0_i32_0, %c0_i32_1 : i32, i32, i32, i32
  }
  func.func @transform_4(%arg0: i32) -> (i32, i32, i32) {
    %c0_i32 = arith.constant 0 : i32
    %c0_i32_0 = arith.constant 0 : i32
    %c0_i32_1 = arith.constant 0 : i32
    return %arg0, %c0_i32, %c0_i32_0 : i32, i32, i32
  }
}

</mosaic_0001>

<llo_original>
// kernel: tpu_custom_call.1
$region0: #{tpu_custom_call.1}
  #allocation0 [shape = 'u32[]', space=smem, size = 0x4, offset = 0x4, fixed_abs, tag = 'smem constant byte address 0x4 - core index']
  #allocation1 [shape = 'u32[72,128]{1,0:T(1,128)}', space=vmem, size = 0x9000, scoped, tag = 'internal scratch']
  %s0 = inlined_call_operand.vmem [shape: f32[256,64], index: 0, kind: input, shape index: {}]
  %s1 = inlined_call_operand.hbm [shape: f32[4,64,256], index: 1, kind: input, shape index: {}]
  %s2 = inlined_call_operand.hbm [shape: f32[4,4,64,64], index: 2, kind: input, shape index: {}]
  %s3 = inlined_call_operand.vmem [shape: f32[4,4,1,64], index: 3, kind: input, shape index: {}]
  %s4 = inlined_call_operand.hbm [shape: f32[4,64,64], index: 4, kind: output, shape index: {}]
  %s5 = sld [smem:[#allocation0]]
  $region57: #{tpu_custom_call.1} parent=0
    _
  %s7 = ssub.s32 1, %s5
  %s8 = scalar_select 0, %s7, %s5
  $region1: #{tpu_custom_call.1} parent=0
    #allocation2 [shape = 'u8[131072]{0}', space=vmem, size = 0x20000, scoped, tag = 'input window, operand 1']
    #allocation3 [shape = 's32[2]{0}', space=sflag, size = 0x8, scoped, tag = 'scoped memory for tpu_custom_call.1']
    #allocation4 [shape = 's32[2]{0}', space=sflag, size = 0x8, scoped, tag = 'scoped memory for tpu_custom_call.1']
    #allocation5 [shape = 'u8[262144]{0}', space=vmem, size = 0x40000, scoped, tag = 'input window, operand 2']
    #allocation6 [shape = 's32[2]{0}', space=sflag, size = 0x8, scoped, tag = 'scoped memory for tpu_custom_call.1']
    #allocation7 [shape = 'u8[65536]{0}', space=vmem, size = 0x10000, scoped, tag = 'output window, operand 0']
    %9 = vsyncpa [#allocation3], 0
    %s10 = scalar_lea.sflag [#allocation3], 1
    %11 = vsyncpa %s10, 0
    %12 = vsyncpa [#allocation6], 0
    %s13 = scalar_lea.sflag [#allocation6], 1
    %14 = vsyncpa %s13, 0
    %15 = vsyncpa [#allocation4], 0
    %s16 = scalar_lea.sflag [#allocation4], 1
    %17 = vsyncpa %s16, 0
    loop: start=0, step=1, limit=6
    $region2: #{tpu_custom_call.1} parent=1 // loop_pre_header
      _
    $region3: #{tpu_custom_call.1} parent=1 // loop_header
      %s19 = sphi 0, %s23
      %p20 = scmp.ge.s32.totalorder %s19, 6
      %s27 = sphi 0, %s27
      %s29 = sphi 0, %s27
      %s30 = sphi 0, %s29
      %s44 = sphi 0, %s30
      %s50 = sphi 0, %s52
      %s53 = sphi 0, %s50
      %s54 = sphi 0, %s53
      %s70 = sphi 0, %s54
      %s76 = sphi 0, %s78
      %s79 = sphi 0, %s76
      %s80 = sphi 0, %s79
      %s96 = sphi 0, %s80
      %s102 = sphi 0, %s104
      %s105 = sphi 0, %s102
      %s106 = sphi 0, %s105
      %s122 = sphi 0, %s106
      %s128 = sphi 0, %s130
      %s131 = sphi 0, %s128
      %s132 = sphi 0, %s131
      %s148 = sphi 0, %s132
    $region4: #{tpu_custom_call.1} parent=1 // loop_header_branch
      %22 = sbr.rel (%p20) target = $region8
    $region5: #{tpu_custom_call.1} parent=1 // loop_body
      %s24 = ssub.s32 %s19, 1
      %s25 = ssub.s32 %s19, 2
      %s26 = sadd.s32 %s19, 1
      %s28 = sadd.s32 %s27, 1
      %p31 = scmp.eq.s32.totalorder %s19, 3
      %p32 = scmp.ne.s32.totalorder %s27, %s29
      %p33 = scmp.eq.s32.totalorder %s19, 0
      %p34 = por %p32, %p33
      %p35 = scmp.ne.s32.totalorder %s27, %s29
      %p36 = scmp.eq.s32.totalorder %s24, 3
      %p37 = por %p35, %p36
      %p38 = scmp.ne.s32.totalorder %s29, %s30
      %p39 = scmp.eq.s32.totalorder %s24, 0
      %p40 = por %p38, %p39
      %p41 = scmp.ne.s32.totalorder %s29, %s30
      %p42 = scmp.eq.s32.totalorder %s25, 3
      %p43 = por %p41, %p42
      %p45 = scmp.ne.s32.totalorder %s30, %s44
      %p46 = scmp.eq.s32.totalorder %s25, 0
      %p47 = por %p45, %p46
      %s48 = ssub.s32 %s19, %s26
      %p49 = scmp.eq.s32.totalorder %s48, 0
      %s51 = sadd.s32 %s50, 1
      %s52 = scalar_select %p49, %s50, %s51
      %p55 = pneg %p49
      %p56 = scmp.eq.s32.totalorder %s19, 3
      %p57 = por %p55, %p56
      %p58 = scmp.ne.s32.totalorder %s50, %s53
      %p59 = scmp.eq.s32.totalorder %s19, 0
      %p60 = por %p58, %p59
      %p61 = scmp.ne.s32.totalorder %s50, %s53
      %p62 = scmp.eq.s32.totalorder %s24, 3
      %p63 = por %p61, %p62
      %p64 = scmp.ne.s32.totalorder %s53, %s54
      %p65 = scmp.eq.s32.totalorder %s24, 0
      %p66 = por %p64, %p65
      %p67 = scmp.ne.s32.totalorder %s53, %s54
      %p68 = scmp.eq.s32.totalorder %s25, 3
      %p69 = por %p67, %p68
      %p71 = scmp.ne.s32.totalorder %s54, %s70
      %p72 = scmp.eq.s32.totalorder %s25, 0
      %p73 = por %p71, %p72
      %s74 = ssub.s32 %s19, %s26
      %p75 = scmp.eq.s32.totalorder %s74, 0
      %s77 = sadd.s32 %s76, 1
      %s78 = scalar_select %p75, %s76, %s77
      %p81 = pneg %p75
      %p82 = scmp.eq.s32.totalorder %s19, 3
      %p83 = por %p81, %p82
      %p84 = scmp.ne.s32.totalorder %s76, %s79
      %p85 = scmp.eq.s32.totalorder %s19, 0
      %p86 = por %p84, %p85
      %p87 = scmp.ne.s32.totalorder %s76, %s79
      %p88 = scmp.eq.s32.totalorder %s24, 3
      %p89 = por %p87, %p88
      %p90 = scmp.ne.s32.totalorder %s79, %s80
      %p91 = scmp.eq.s32.totalorder %s24, 0
      %p92 = por %p90, %p91
      %p93 = scmp.ne.s32.totalorder %s79, %s80
      %p94 = scmp.eq.s32.totalorder %s25, 3
      %p95 = por %p93, %p94
      %p97 = scmp.ne.s32.totalorder %s80, %s96
      %p98 = scmp.eq.s32.totalorder %s25, 0
      %p99 = por %p97, %p98
      %s100 = ssub.s32 %s19, %s26
      %p101 = scmp.eq.s32.totalorder %s100, 0
      %s103 = sadd.s32 %s102, 1
      %s104 = scalar_select %p101, %s102, %s103
      %p107 = pneg %p101
      %p108 = scmp.eq.s32.totalorder %s19, 3
      %p109 = por %p107, %p108
      %p110 = scmp.ne.s32.totalorder %s102, %s105
      %p111 = scmp.eq.s32.totalorder %s19, 0
      %p112 = por %p110, %p111
      %p113 = scmp.ne.s32.totalorder %s102, %s105
      %p114 = scmp.eq.s32.totalorder %s24, 3
      %p115 = por %p113, %p114
      %p116 = scmp.ne.s32.totalorder %s105, %s106
      %p117 = scmp.eq.s32.totalorder %s24, 0
      %p118 = por %p116, %p117
      %p119 = scmp.ne.s32.totalorder %s105, %s106
      %p120 = scmp.eq.s32.totalorder %s25, 3
      %p121 = por %p119, %p120
      %p123 = scmp.ne.s32.totalorder %s106, %s122
      %p124 = scmp.eq.s32.totalorder %s25, 0
      %p125 = por %p123, %p124
      %s126 = ssub.s32 %s19, %s26
      %p127 = scmp.eq.s32.totalorder %s126, 0
      %s129 = sadd.s32 %s128, 1
      %s130 = scalar_select %p127, %s128, %s129
      %p133 = pneg %p127
      %p134 = scmp.eq.s32.totalorder %s19, 3
      %p135 = por %p133, %p134
      %p136 = scmp.ne.s32.totalorder %s128, %s131
      %p137 = scmp.eq.s32.totalorder %s19, 0
      %p138 = por %p136, %p137
      %p139 = scmp.ne.s32.totalorder %s128, %s131
      %p140 = scmp.eq.s32.totalorder %s24, 3
      %p141 = por %p139, %p140
      %p142 = scmp.ne.s32.totalorder %s131, %s132
      %p143 = scmp.eq.s32.totalorder %s24, 0
      %p144 = por %p142, %p143
      %p145 = scmp.ne.s32.totalorder %s131, %s132
      %p146 = scmp.eq.s32.totalorder %s25, 3
      %p147 = por %p145, %p146
      %p149 = scmp.ne.s32.totalorder %s132, %s148
      %p150 = scmp.eq.s32.totalorder %s25, 0
      %p151 = por %p149, %p150
      %p152 = scmp.le.s32.totalorder 1, %s19
      %p153 = scmp.lt.s32.totalorder %s19, 5
      %p154 = pnand %p152, %p153
      %p155 = pneg %p154
      // Predicated region
      $region9: #{tpu_custom_call.1} parent=5 // pred_check
        _
      $region10: #{tpu_custom_call.1} parent=5 // pred_check_branch
        %157 = sbr.rel (%p154) target = $region12
      $region11: #{tpu_custom_call.1} parent=5 // pred_region
        %s158 = ssub.s32 %s19, 1
        // Predicated region
        $region13: #{tpu_custom_call.1} parent=11 // pred_check
          %p159 = pneg %p40
        $region14: #{tpu_custom_call.1} parent=11 // pred_check_branch
          %161 = sbr.rel (%p159) target = $region16
        $region15: #{tpu_custom_call.1} parent=11 // pred_region
          _
        $region16: #{tpu_custom_call.1} parent=11 // pred_fallthru
          _
      $region12: #{tpu_custom_call.1} parent=5 // pred_fallthru
        _
      %p162 = scmp.lt.s32.totalorder %s19, 4
      // Predicated region
      $region17: #{tpu_custom_call.1} parent=5 // pred_check
        %p163 = pneg %p162
      $region18: #{tpu_custom_call.1} parent=5 // pred_check_branch
        %165 = sbr.rel (%p163) target = $region20
      $region19: #{tpu_custom_call.1} parent=5 // pred_region
        // Predicated region
        $region21: #{tpu_custom_call.1} parent=19 // pred_check
          %p166 = pneg %p60
        $region22: #{tpu_custom_call.1} parent=19 // pred_check_branch
          %168 = sbr.rel (%p166) target = $region24
        $region23: #{tpu_custom_call.1} parent=19 // pred_region
          %s169 = sand.u32 %s50, 1
          %s170 = scalar_lea.sflag [#allocation3], %s169
          %s171 = sand.u32 %s50, 1
          %s172 = smul.addr %s171, 128
          %s173 = scalar_lea.vmem [#allocation2], %s172
          %175 = vsyncadd %s170, 0
          %s176 = smul.addr %s19, 16
          %s177 = smul.addr %s176, 8
          %s178 = scalar_lea.hbm %s1, %s177
          %s179 = sshll.u32 %s178, 4
          %s180 = int_to_ptr.hbm [resolvable:$true] %s179
          %s181 = sshll.u32 %s173, 4
          %s182 = int_to_ptr.vmem [resolvable:$true] %s181
          %187 = dma.hbm_to_vmem [thread:$0]  %s180, 2048, %s182, %s170, 256, 256, 16
        $region24: #{tpu_custom_call.1} parent=19 // pred_fallthru
          _
        // Predicated region
        $region25: #{tpu_custom_call.1} parent=19 // pred_check
          %p188 = pneg %p86
        $region26: #{tpu_custom_call.1} parent=19 // pred_check_branch
          %190 = sbr.rel (%p188) target = $region28
        $region27: #{tpu_custom_call.1} parent=19 // pred_region
          %s191 = sand.u32 %s76, 1
          %s192 = scalar_lea.sflag [#allocation6], %s191
          %s193 = sand.u32 %s76, 1
          %s194 = smul.addr %s193, 256
          %s195 = scalar_lea.vmem [#allocation5], %s194
          %197 = vsyncadd %s192, 0
          %s198 = smul.addr %s19, 32
          %s199 = smul.addr %s198, 8
          %s200 = scalar_lea.hbm %s2, %s199
          %s201 = sshll.u32 %s200, 4
          %s202 = int_to_ptr.hbm [resolvable:$true] %s201
          %s203 = sshll.u32 %s195, 4
          %s204 = int_to_ptr.vmem [resolvable:$true] %s203
          %209 = dma.hbm_to_vmem [thread:$0]  %s202, 4096, %s204, %s192, 128, 128, 8
        $region28: #{tpu_custom_call.1} parent=19 // pred_fallthru
          _
        // Predicated region
        $region29: #{tpu_custom_call.1} parent=19 // pred_check
          %p210 = pneg %p112
        $region30: #{tpu_custom_call.1} parent=19 // pred_check_branch
          %212 = sbr.rel (%p210) target = $region32
        $region31: #{tpu_custom_call.1} parent=19 // pred_region
          %p213 = scmp.lt.s32.totalorder %s19, 3
          %s214 = scalar_select %p213, %s19, 3
          %s215 = smul.addr %s214, 4
          %s216 = scalar_lea.vmem %s3, %s215
        $region32: #{tpu_custom_call.1} parent=19 // pred_fallthru
          _
      $region20: #{tpu_custom_call.1} parent=5 // pred_fallthru
        _
      %p217 = scmp.le.s32.totalorder 1, %s19
      %p218 = scmp.lt.s32.totalorder %s19, 5
      %p219 = pnand %p217, %p218
      %p220 = pneg %p219
      // Predicated region
      $region33: #{tpu_custom_call.1} parent=5 // pred_check
        _
      $region34: #{tpu_custom_call.1} parent=5 // pred_check_branch
        %222 = sbr.rel (%p219) target = $region36
      $region35: #{tpu_custom_call.1} parent=5 // pred_region
        %s223 = ssub.s32 %s19, 1
        %s224 = sand.u32 %s53, 1
        %s225 = scalar_lea.sflag [#allocation3], %s224
        %s226 = sand.u32 %s53, 1
        %s227 = smul.addr %s226, 128
        %s228 = scalar_lea.vmem [#allocation2], %s227
        // Predicated region
        $region37: #{tpu_custom_call.1} parent=35 // pred_check
          %p229 = pneg %p66
        $region38: #{tpu_custom_call.1} parent=35 // pred_check_branch
          %231 = sbr.rel (%p229) target = $region40
        $region39: #{tpu_custom_call.1} parent=35 // pred_region
          %233 = dma.done %s225, 2048
        $region40: #{tpu_custom_call.1} parent=35 // pred_fallthru
          _
        %s234 = sand.u32 %s79, 1
        %s235 = scalar_lea.sflag [#allocation6], %s234
        %s236 = sand.u32 %s79, 1
        %s237 = smul.addr %s236, 256
        %s238 = scalar_lea.vmem [#allocation5], %s237
        // Predicated region
        $region41: #{tpu_custom_call.1} parent=35 // pred_check
          %p239 = pneg %p92
        $region42: #{tpu_custom_call.1} parent=35 // pred_check_branch
          %241 = sbr.rel (%p239) target = $region44
        $region43: #{tpu_custom_call.1} parent=35 // pred_region
          %243 = dma.done %s235, 4096
        $region44: #{tpu_custom_call.1} parent=35 // pred_fallthru
          _
        %p244 = pneg %p40
        %p245 = pneg %p37
        %s246 = sand.u32 %s53, 1
        %s247 = scalar_lea.sflag [#allocation3], %s246
        %s248 = sand.u32 %s53, 1
        %s249 = smul.addr %s248, 128
        %s250 = scalar_lea.vmem [#allocation2], %s249
        %p251 = pneg %p66
        %p252 = pneg %p63
        %s253 = sand.u32 %s79, 1
        %s254 = scalar_lea.sflag [#allocation6], %s253
        %s255 = sand.u32 %s79, 1
        %s256 = smul.addr %s255, 256
        %s257 = scalar_lea.vmem [#allocation5], %s256
        %p258 = pneg %p92
        %p259 = pneg %p89
        %p260 = scmp.lt.s32.totalorder %s24, 3
        %s261 = scalar_select %p260, %s24, 3
        %s262 = smul.addr %s261, 4
        %s263 = scalar_lea.vmem %s3, %s262
        %p264 = pneg %p118
        %p265 = pneg %p115
        %p266 = pneg %p144
        %p267 = pneg %p141
        %s268 = sand.u32 %s131, 1
        %s269 = scalar_lea.sflag [#allocation4], %s268
        %s270 = sand.u32 %s131, 1
        %s271 = smul.addr %s270, 64
        %s272 = scalar_lea.vmem [#allocation7], %s271
        %p273 = scmp.lt.s32.totalorder %s24, 3
        %s274 = scalar_select %p273, %s24, 3
        %s275 = smul.addr %s274, 4
        %s276 = scalar_lea.vmem %s3, %s275
        %v277 = vld [vmem:[%s228] sm:$0xff]
        %v278 = vld [vmem:[%s228 + $0x8] sm:$0xff]
        %v279 = vld [vmem:[%s228 + $0x10] sm:$0xff]
        %v280 = vld [vmem:[%s228 + $0x18] sm:$0xff]
        %v281 = vld [vmem:[%s228 + $0x20] sm:$0xff]
        %v282 = vld [vmem:[%s228 + $0x28] sm:$0xff]
        %v283 = vld [vmem:[%s228 + $0x30] sm:$0xff]
        %v284 = vld [vmem:[%s228 + $0x38] sm:$0xff]
        %v285 = vld [vmem:[%s228 + $0x40] sm:$0xff]
        %v286 = vld [vmem:[%s228 + $0x48] sm:$0xff]
        %v287 = vld [vmem:[%s228 + $0x50] sm:$0xff]
        %v288 = vld [vmem:[%s228 + $0x58] sm:$0xff]
        %v289 = vld [vmem:[%s228 + $0x60] sm:$0xff]
        %v290 = vld [vmem:[%s228 + $0x68] sm:$0xff]
        %v291 = vld [vmem:[%s228 + $0x70] sm:$0xff]
        %v292 = vld [vmem:[%s228 + $0x78] sm:$0xff]
        %v293 = vld [vmem:[%s0] sm:$0xff]
        %v294 = vld [vmem:[%s0 + $0x8] sm:$0xff]
        %v295 = vld [vmem:[%s0 + $0x10] sm:$0xff]
        %v296 = vld [vmem:[%s0 + $0x18] sm:$0xff]
        %v297 = vld [vmem:[%s0 + $0x20] sm:$0xff]
        %v298 = vld [vmem:[%s0 + $0x28] sm:$0xff]
        %v299 = vld [vmem:[%s0 + $0x30] sm:$0xff]
        %v300 = vld [vmem:[%s0 + $0x38] sm:$0xff]
        %v301 = vld [vmem:[%s0 + $0x40] sm:$0xff]
        %v302 = vld [vmem:[%s0 + $0x48] sm:$0xff]
        %v303 = vld [vmem:[%s0 + $0x50] sm:$0xff]
        %v304 = vld [vmem:[%s0 + $0x58] sm:$0xff]
        %v305 = vld [vmem:[%s0 + $0x60] sm:$0xff]
        %v306 = vld [vmem:[%s0 + $0x68] sm:$0xff]
        %v307 = vld [vmem:[%s0 + $0x70] sm:$0xff]
        %v308 = vld [vmem:[%s0 + $0x78] sm:$0xff]
        %v309 = vld [vmem:[%s0 + $0x80] sm:$0xff]
        %v310 = vld [vmem:[%s0 + $0x88] sm:$0xff]
        %v311 = vld [vmem:[%s0 + $0x90] sm:$0xff]
        %v312 = vld [vmem:[%s0 + $0x98] sm:$0xff]
        %v313 = vld [vmem:[%s0 + $0xa0] sm:$0xff]
        %v314 = vld [vmem:[%s0 + $0xa8] sm:$0xff]
        %v315 = vld [vmem:[%s0 + $0xb0] sm:$0xff]
        %v316 = vld [vmem:[%s0 + $0xb8] sm:$0xff]
        %v317 = vld [vmem:[%s0 + $0xc0] sm:$0xff]
        %v318 = vld [vmem:[%s0 + $0xc8] sm:$0xff]
        %v319 = vld [vmem:[%s0 + $0xd0] sm:$0xff]
        %v320 = vld [vmem:[%s0 + $0xd8] sm:$0xff]
        %v321 = vld [vmem:[%s0 + $0xe0] sm:$0xff]
        %v322 = vld [vmem:[%s0 + $0xe8] sm:$0xff]
        %v323 = vld [vmem:[%s0 + $0xf0] sm:$0xff]
        %v324 = vld [vmem:[%s0 + $0xf8] sm:$0xff]
        %325 = vmatpush.msra.mxu0 %v308
        %326 = vmatpush.msra.mxu0 %v307
        %327 = vmatpush.msra.mxu0 %v306
        %328 = vmatpush.msra.mxu0 %v305
        %329 = vmatpush.msra.mxu0 %v304
        %330 = vmatpush.msra.mxu0 %v303
        %331 = vmatpush.msra.mxu0 %v302
        %332 = vmatpush.msra.mxu0 %v301
        %333 = vmatpush.msra.mxu0 %v300
        %334 = vmatpush.msra.mxu0 %v299
        %335 = vmatpush.msra.mxu0 %v298
        %336 = vmatpush.msra.mxu0 %v297
        %337 = vmatpush.msra.mxu0 %v296
        %338 = vmatpush.msra.mxu0 %v295
        %339 = vmatpush.msra.mxu0 %v294
        %340 = vmatpush.msra.mxu0 %v293
        %341 = vmatmul.f32.gmra.mxu0 %v277
        %v342 = vpop.f32.mrf.mxu0
        %v343 = vadd.f32 0.0, %v342
        %344 = vmatmul.f32.gmra.mxu0 %v279
        %v345 = vpop.f32.mrf.mxu0
        %v346 = vadd.f32 0.0, %v345
        %347 = vmatmul.f32.gmra.mxu0 %v281
        %v348 = vpop.f32.mrf.mxu0
        %v349 = vadd.f32 0.0, %v348
        %350 = vmatmul.f32.gmra.mxu0 %v283
        %v351 = vpop.f32.mrf.mxu0
        %v352 = vadd.f32 0.0, %v351
        %353 = vmatmul.f32.gmra.mxu0 %v285
        %v354 = vpop.f32.mrf.mxu0
        %v355 = vadd.f32 0.0, %v354
        %356 = vmatmul.f32.gmra.mxu0 %v287
        %v357 = vpop.f32.mrf.mxu0
        %v358 = vadd.f32 0.0, %v357
        %359 = vmatmul.f32.gmra.mxu0 %v289
        %v360 = vpop.f32.mrf.mxu0
        %v361 = vadd.f32 0.0, %v360
        %362 = vmatmul.f32.gmra.mxu0 %v291
        %v363 = vpop.f32.mrf.mxu0
        %v364 = vadd.f32 0.0, %v363
        %365 = vdwg.mxu0
        %366 = vmatpush.msra.mxu0 %v324
        %367 = vmatpush.msra.mxu0 %v323
        %368 = vmatpush.msra.mxu0 %v322
        %369 = vmatpush.msra.mxu0 %v321
        %370 = vmatpush.msra.mxu0 %v320
        %371 = vmatpush.msra.mxu0 %v319
        %372 = vmatpush.msra.mxu0 %v318
        %373 = vmatpush.msra.mxu0 %v317
        %374 = vmatpush.msra.mxu0 %v316
        %375 = vmatpush.msra.mxu0 %v315
        %376 = vmatpush.msra.mxu0 %v314
        %377 = vmatpush.msra.mxu0 %v313
        %378 = vmatpush.msra.mxu0 %v312
        %379 = vmatpush.msra.mxu0 %v311
        %380 = vmatpush.msra.mxu0 %v310
        %381 = vmatpush.msra.mxu0 %v309
        %382 = vmatmul.f32.gmra.mxu0 %v278
        %v383 = vpop.f32.mrf.mxu0
        %v384 = vadd.f32 %v343, %v383
        %385 = vmatmul.f32.gmra.mxu0 %v280
        %v386 = vpop.f32.mrf.mxu0
        %v387 = vadd.f32 %v346, %v386
        %388 = vmatmul.f32.gmra.mxu0 %v282
        %v389 = vpop.f32.mrf.mxu0
        %v390 = vadd.f32 %v349, %v389
        %391 = vmatmul.f32.gmra.mxu0 %v284
        %v392 = vpop.f32.mrf.mxu0
        %v393 = vadd.f32 %v352, %v392
        %394 = vmatmul.f32.gmra.mxu0 %v286
        %v395 = vpop.f32.mrf.mxu0
        %v396 = vadd.f32 %v355, %v395
        %397 = vmatmul.f32.gmra.mxu0 %v288
        %v398 = vpop.f32.mrf.mxu0
        %v399 = vadd.f32 %v358, %v398
        %400 = vmatmul.f32.gmra.mxu0 %v290
        %v401 = vpop.f32.mrf.mxu0
        %v402 = vadd.f32 %v361, %v401
        %403 = vmatmul.f32.gmra.mxu0 %v292
        %v404 = vpop.f32.mrf.mxu0
        %v405 = vadd.f32 %v364, %v404
        %406 = vdwg.mxu0
        %v407 = vld [vmem:[%s238] sm:$0xff]
        %v408 = vld [vmem:[%s238 + $0x8] sm:$0xff]
        %v409 = vld [vmem:[%s238 + $0x10] sm:$0xff]
        %v410 = vld [vmem:[%s238 + $0x18] sm:$0xff]
        %v411 = vld [vmem:[%s238 + $0x20] sm:$0xff]
        %v412 = vld [vmem:[%s238 + $0x28] sm:$0xff]
        %v413 = vld [vmem:[%s238 + $0x30] sm:$0xff]
        %v414 = vld [vmem:[%s238 + $0x38] sm:$0xff]
        %v415 = vld [vmem:[%s276] sm:$0x1]
        %v417 = vperm.slane %v415, 0
        %vm419 = vcmask 523264
        %v421 = vsel %vm419, %v384, 0
        %v424 = vsel %vm419, %v387, 0
        %426 = vmatpush.msra.mxu0 0.0
        %427 = vmatpush.msra.mxu0 0.0
        %428 = vmatpush.msra.mxu0 0.0
        %429 = vmatpush.msra.mxu0 0.0
        %430 = vmatpush.msra.mxu0 0.0
        %431 = vmatpush.msra.mxu0 0.0
        %432 = vmatpush.msra.mxu0 0.0
        %433 = vmatpush.msra.mxu0 0.0
        %434 = vmatpush.msra.mxu0 %v414
        %435 = vmatpush.msra.mxu0 %v413
        %436 = vmatpush.msra.mxu0 %v412
        %437 = vmatpush.msra.mxu0 %v411
        %438 = vmatpush.msra.mxu0 %v410
        %439 = vmatpush.msra.mxu0 %v409
        %440 = vmatpush.msra.mxu0 %v408
        %441 = vmatpush.msra.mxu0 %v407
        %442 = vmatmul.f32.gmra.mxu0 %v421
        %v443 = vpop.f32.mrf.mxu0
        %v444 = vadd.f32 %v417, %v443
        %445 = vmatmul.f32.gmra.mxu0 %v424
        %v446 = vpop.f32.mrf.mxu0
        %v447 = vadd.f32 %v417, %v446
        %448 = vdwg.mxu0
        %449 = vst.msk [vmem:[%s272] sm:$0xff] %vm419, %v444
        %450 = vst.msk [vmem:[%s272 + $0x8] sm:$0xff] %vm419, %v447
        %s451 = scalar_lea.vmem %s238, 64 [#allocation5]
        %v452 = vld [vmem:[%s451] sm:$0xff]
        %v453 = vld [vmem:[%s451 + $0x8] sm:$0xff]
        %v454 = vld [vmem:[%s451 + $0x10] sm:$0xff]
        %v455 = vld [vmem:[%s451 + $0x18] sm:$0xff]
        %v456 = vld [vmem:[%s451 + $0x20] sm:$0xff]
        %v457 = vld [vmem:[%s451 + $0x28] sm:$0xff]
        %v458 = vld [vmem:[%s451 + $0x30] sm:$0xff]
        %v459 = vld [vmem:[%s451 + $0x38] sm:$0xff]
        %s460 = scalar_lea.vmem %s276, 1
        %v461 = vld [vmem:[%s460] sm:$0x1]
        %v463 = vperm.slane %v461, 0
        %v466 = vsel %vm419, %v390, 0
        %v469 = vsel %vm419, %v393, 0
        %471 = vmatpush.msra.mxu0 0.0
        %472 = vmatpush.msra.mxu0 0.0
        %473 = vmatpush.msra.mxu0 0.0
        %474 = vmatpush.msra.mxu0 0.0
        %475 = vmatpush.msra.mxu0 0.0
        %476 = vmatpush.msra.mxu0 0.0
        %477 = vmatpush.msra.mxu0 0.0
        %478 = vmatpush.msra.mxu0 0.0
        %479 = vmatpush.msra.mxu0 %v459
        %480 = vmatpush.msra.mxu0 %v458
        %481 = vmatpush.msra.mxu0 %v457
        %482 = vmatpush.msra.mxu0 %v456
        %483 = vmatpush.msra.mxu0 %v455
        %484 = vmatpush.msra.mxu0 %v454
        %485 = vmatpush.msra.mxu0 %v453
        %486 = vmatpush.msra.mxu0 %v452
        %487 = vmatmul.f32.gmra.mxu0 %v466
        %v488 = vpop.f32.mrf.mxu0
        %v489 = vadd.f32 %v463, %v488
        %490 = vmatmul.f32.gmra.mxu0 %v469
        %v491 = vpop.f32.mrf.mxu0
        %v492 = vadd.f32 %v463, %v491
        %493 = vdwg.mxu0
        %494 = vst.msk [vmem:[%s272 + $0x10] sm:$0xff] %vm419, %v489
        %495 = vst.msk [vmem:[%s272 + $0x18] sm:$0xff] %vm419, %v492
        %s496 = scalar_lea.vmem %s238, 128 [#allocation5]
        %v497 = vld [vmem:[%s496] sm:$0xff]
        %v498 = vld [vmem:[%s496 + $0x8] sm:$0xff]
        %v499 = vld [vmem:[%s496 + $0x10] sm:$0xff]
        %v500 = vld [vmem:[%s496 + $0x18] sm:$0xff]
        %v501 = vld [vmem:[%s496 + $0x20] sm:$0xff]
        %v502 = vld [vmem:[%s496 + $0x28] sm:$0xff]
        %v503 = vld [vmem:[%s496 + $0x30] sm:$0xff]
        %v504 = vld [vmem:[%s496 + $0x38] sm:$0xff]
        %s505 = scalar_lea.vmem %s276, 2
        %v506 = vld [vmem:[%s505] sm:$0x1]
        %v508 = vperm.slane %v506, 0
        %v511 = vsel %vm419, %v396, 0
        %v514 = vsel %vm419, %v399, 0
        %516 = vmatpush.msra.mxu0 0.0
        %517 = vmatpush.msra.mxu0 0.0
        %518 = vmatpush.msra.mxu0 0.0
        %519 = vmatpush.msra.mxu0 0.0
        %520 = vmatpush.msra.mxu0 0.0
        %521 = vmatpush.msra.mxu0 0.0
        %522 = vmatpush.msra.mxu0 0.0
        %523 = vmatpush.msra.mxu0 0.0
        %524 = vmatpush.msra.mxu0 %v504
        %525 = vmatpush.msra.mxu0 %v503
        %526 = vmatpush.msra.mxu0 %v502
        %527 = vmatpush.msra.mxu0 %v501
        %528 = vmatpush.msra.mxu0 %v500
        %529 = vmatpush.msra.mxu0 %v499
        %530 = vmatpush.msra.mxu0 %v498
        %531 = vmatpush.msra.mxu0 %v497
        %532 = vmatmul.f32.gmra.mxu0 %v511
        %v533 = vpop.f32.mrf.mxu0
        %v534 = vadd.f32 %v508, %v533
        %535 = vmatmul.f32.gmra.mxu0 %v514
        %v536 = vpop.f32.mrf.mxu0
        %v537 = vadd.f32 %v508, %v536
        %538 = vdwg.mxu0
        %539 = vst.msk [vmem:[%s272 + $0x20] sm:$0xff] %vm419, %v534
        %540 = vst.msk [vmem:[%s272 + $0x28] sm:$0xff] %vm419, %v537
        %s541 = scalar_lea.vmem %s238, 192 [#allocation5]
        %v542 = vld [vmem:[%s541] sm:$0xff]
        %v543 = vld [vmem:[%s541 + $0x8] sm:$0xff]
        %v544 = vld [vmem:[%s541 + $0x10] sm:$0xff]
        %v545 = vld [vmem:[%s541 + $0x18] sm:$0xff]
        %v546 = vld [vmem:[%s541 + $0x20] sm:$0xff]
        %v547 = vld [vmem:[%s541 + $0x28] sm:$0xff]
        %v548 = vld [vmem:[%s541 + $0x30] sm:$0xff]
        %v549 = vld [vmem:[%s541 + $0x38] sm:$0xff]
        %s550 = scalar_lea.vmem %s276, 3
        %v551 = vld [vmem:[%s550] sm:$0x1]
        %v553 = vperm.slane %v551, 0
        %v556 = vsel %vm419, %v402, 0
        %v559 = vsel %vm419, %v405, 0
        %561 = vmatpush.msra.mxu0 0.0
        %562 = vmatpush.msra.mxu0 0.0
        %563 = vmatpush.msra.mxu0 0.0
        %564 = vmatpush.msra.mxu0 0.0
        %565 = vmatpush.msra.mxu0 0.0
        %566 = vmatpush.msra.mxu0 0.0
        %567 = vmatpush.msra.mxu0 0.0
        %568 = vmatpush.msra.mxu0 0.0
        %569 = vmatpush.msra.mxu0 %v549
        %570 = vmatpush.msra.mxu0 %v548
        %571 = vmatpush.msra.mxu0 %v547
        %572 = vmatpush.msra.mxu0 %v546
        %573 = vmatpush.msra.mxu0 %v545
        %574 = vmatpush.msra.mxu0 %v544
        %575 = vmatpush.msra.mxu0 %v543
        %576 = vmatpush.msra.mxu0 %v542
        %577 = vmatmul.f32.gmra.mxu0 %v556
        %v578 = vpop.f32.mrf.mxu0
        %v579 = vadd.f32 %v553, %v578
        %580 = vmatmul.f32.gmra.mxu0 %v559
        %v581 = vpop.f32.mrf.mxu0
        %v582 = vadd.f32 %v553, %v581
        %583 = vdwg.mxu0
        %584 = vst.msk [vmem:[%s272 + $0x30] sm:$0xff] %vm419, %v579
        %585 = vst.msk [vmem:[%s272 + $0x38] sm:$0xff] %vm419, %v582
        %s586 = sand.u32 %s131, 1
        %s587 = scalar_lea.sflag [#allocation4], %s586
        %s588 = sand.u32 %s131, 1
        %s589 = smul.addr %s588, 64
        %s590 = scalar_lea.vmem [#allocation7], %s589
        // Predicated region
        $region45: #{tpu_custom_call.1} parent=35 // pred_check
          %p591 = pneg %p141
        $region46: #{tpu_custom_call.1} parent=35 // pred_check_branch
          %593 = sbr.rel (%p591) target = $region48
        $region47: #{tpu_custom_call.1} parent=35 // pred_region
          %595 = vsyncadd %s587, 0
          %s596 = smul.addr %s24, 8
          %s597 = smul.addr %s596, 8
          %s598 = scalar_lea.hbm %s4, %s597
          %s599 = sshll.u32 %s590, 4
          %s600 = int_to_ptr.vmem [resolvable:$true] %s599
          %s601 = sshll.u32 %s598, 4
          %s602 = int_to_ptr.hbm [resolvable:$true] %s601
          %607 = dma.vmem_to_hbm [thread:$0]  %s600, 1024, %s602, %s587, 128, 128, 8
        $region48: #{tpu_custom_call.1} parent=35 // pred_fallthru
          _
      $region36: #{tpu_custom_call.1} parent=5 // pred_fallthru
        _
      %p608 = scmp.le.s32.totalorder 2, %s19
      // Predicated region
      $region49: #{tpu_custom_call.1} parent=5 // pred_check
        %p609 = pneg %p608
      $region50: #{tpu_custom_call.1} parent=5 // pred_check_branch
        %611 = sbr.rel (%p609) target = $region52
      $region51: #{tpu_custom_call.1} parent=5 // pred_region
        %s612 = ssub.s32 %s19, 2
        // Predicated region
        $region53: #{tpu_custom_call.1} parent=51 // pred_check
          %p613 = pneg %p147
        $region54: #{tpu_custom_call.1} parent=51 // pred_check_branch
          %615 = sbr.rel (%p613) target = $region56
        $region55: #{tpu_custom_call.1} parent=51 // pred_region
          %s616 = sand.u32 %s132, 1
          %s617 = scalar_lea.sflag [#allocation4], %s616
          %s618 = sand.u32 %s132, 1
          %s619 = smul.addr %s618, 64
          %s620 = scalar_lea.vmem [#allocation7], %s619
          %622 = dma.done %s617, 1024
        $region56: #{tpu_custom_call.1} parent=51 // pred_fallthru
          _
      $region52: #{tpu_custom_call.1} parent=5 // pred_fallthru
        _
    $region6: #{tpu_custom_call.1} parent=1 // loop_footer
      %s23 = sadd.s32 1, %s19
    $region7: #{tpu_custom_call.1} parent=1 // loop_footer_branch
      %18 = sbr.rel target = $region3
    $region8: #{tpu_custom_call.1} parent=1 // loop_exit
      _
    %623 = vsyncpa [#allocation3], 1
    %s624 = scalar_lea.sflag [#allocation3], 1
    %625 = vsyncpa %s624, 1
    %626 = vsyncpa [#allocation6], 1
    %s627 = scalar_lea.sflag [#allocation6], 1
    %628 = vsyncpa %s627, 1
    %629 = vsyncpa [#allocation4], 1
    %s630 = scalar_lea.sflag [#allocation4], 1
    %631 = vsyncpa %s630, 1

</llo_original>
